<compile_context>
chip_gen: v7x
topology: tpu7x:2x2x1
jax: 0.10.0
libtpu: 0.0.40
codegen_flags: <defaults>
</compile_context>

<pallas_src>
import functools

import jax
import jax.numpy as jnp
from jax import lax
from jax.experimental import pallas as pl
from jax.experimental.pallas import tpu as pltpu

N_GMM = 2
Z_DIM = 1
IN_DIM = 118
SMALL_W = 8                      # packed small-output width: z_c, rec1, rec2, gamma0, gamma1, pad*3

# param-list indices of the weights that feed the MXU (cast to bf16)
_MXU_W_IDX = (0, 2, 4, 6, 10, 12, 14, 18)   # w1 w2 w3 w4 w6 w7 w8 w10
_SLAB_ROWS = 16
_SLAB_LANES = 128


def _round_up(v, m):
    return (v + m - 1) // m * m


def dagmm_kernel(x_ref,
                 w1, w2, w3, w4, w6, w7, w8, w10,
                 c_ref,
                 xhat_ref, small_ref):
    f32 = jnp.float32
    bf16 = jnp.bfloat16

    x = x_ref[...]                                        # [TB, 118] f32
    c = c_ref[...]                                        # [16, 128] f32 packed small params

    # unpack biases / rank-1 weights from the constant slab (static slices)
    b1 = c[0:1, :60]
    b2 = c[1:2, :30]
    b3 = c[2:3, :10]
    b4 = c[3:4, :Z_DIM]
    b5 = c[4:5, :10]
    b6 = c[5:6, :30]
    b7 = c[6:7, :60]
    b8 = c[7:8, :IN_DIM]
    b9 = c[8:9, :10]
    b10 = c[9:10, :N_GMM]
    w5 = c[10:11, :10]                                    # fc5 weight (1,10)
    w9_0 = c[11:12, :10]                                  # fc9 weight rows (3,10)
    w9_1 = c[12:13, :10]
    w9_2 = c[13:14, :10]

    def lin(h, w, b):
        # MXU path: bf16 operands, f32 accumulation.
        return jnp.dot(h.astype(bf16), w[...], preferred_element_type=f32) + b

    # ---------------- encoder ----------------
    h = jnp.tanh(lin(x, w1, b1))                          # [TB, 60]
    h = jnp.tanh(lin(h, w2, b2))                          # [TB, 30]
    h = jnp.tanh(lin(h, w3, b3))                          # [TB, 10]
    z_c = lin(h, w4, b4)                                  # [TB, 1]

    # ---------------- decoder ----------------
    # fc5 is a rank-1 product ([TB,1] @ [1,10]) -> VPU broadcast, no MXU push.
    h = jnp.tanh(z_c * w5 + b5)                           # [TB, 10]
    h = jnp.tanh(lin(h, w6, b6))                          # [TB, 30]
    h = jnp.tanh(lin(h, w7, b7))                          # [TB, 60]
    x_hat = lin(h, w8, b8)                                # [TB, 118]

    # --------- reconstruction features (VPU + EUP; one fewer XLU reduce) ----
    sum_xx = jnp.sum(x * x, axis=1, keepdims=True)        # [TB, 1]
    sum_hh = jnp.sum(x_hat * x_hat, axis=1, keepdims=True)
    dot_xh = jnp.sum(x * x_hat, axis=1, keepdims=True)
    # ||x - x_hat||^2 via the polarization identity; clamp tiny cancellation.
    sum_dd = jnp.maximum(sum_xx + sum_hh - 2.0 * dot_xh, 0.0)

    eps = jnp.float32(1e-8)                               # torch cosine_similarity eps
    # relative euclidean distance: torch has no eps guard here (parity kept)
    rec1 = jnp.sqrt(sum_dd) * lax.rsqrt(sum_xx)           # [TB, 1]
    # cosine similarity with per-norm eps clamp
    rec2 = dot_xh * (lax.rsqrt(jnp.maximum(sum_xx, eps * eps)) *
                     lax.rsqrt(jnp.maximum(sum_hh, eps * eps)))

    # ------------- estimation network ----------
    # fc9 on z = [z_c, rec1, rec2]: decomposed into rank-1 VPU products,
    # no narrow-lane concatenate and no MXU push.
    h9 = jnp.tanh(z_c * w9_0 + rec1 * w9_1 + rec2 * w9_2 + b9)   # [TB, 10]
    # TODO(synk): F.dropout(p=0.5) defaults to training mode (stochastic);
    # implemented as identity (eval semantics) for determinism.
    logits = lin(h9, w10, b10)                            # [TB, 2]
    # 2-class softmax == sigmoid of the logit difference (exact rewrite;
    # avoids cross-lane max/sum over a 2-lane axis and the approx reciprocal).
    g0 = jax.nn.sigmoid(logits[:, 0:1] - logits[:, 1:2])  # [TB, 1]
    g1 = 1.0 - g0

    # ---------------- stores: 2 lane-dense writes per step -----------------
    xhat_ref[...] = x_hat
    pad3 = jnp.zeros((x.shape[0], 3), f32)
    small_ref[...] = jnp.concatenate([z_c, rec1, rec2, g0, g1, pad3], axis=1)


def init_params(key):
    """Deterministic PyTorch-Linear-style init: U(-1/sqrt(fan_in), +)."""
    dims = [(IN_DIM, 60), (60, 30), (30, 10), (10, Z_DIM),      # encoder
            (Z_DIM, 10), (10, 30), (30, 60), (60, IN_DIM),      # decoder
            (Z_DIM + 2, 10), (10, N_GMM)]                       # estimator
    params = []
    for din, dout in dims:
        key, kw, kb = jax.random.split(key, 3)
        bound = 1.0 / (din ** 0.5)
        w = jax.random.uniform(kw, (din, dout), jnp.float32, -bound, bound)
        b = jax.random.uniform(kb, (1, dout), jnp.float32, -bound, bound)
        params.extend([w, b])
    return params


def _prepare_params(params):
    """bf16-cast the MXU weights; pack biases + w5 + w9 into one f32 slab."""
    p = list(params)
    mxu_ws = tuple(p[i].astype(jnp.bfloat16) for i in _MXU_W_IDX)

    slab = jnp.zeros((_SLAB_ROWS, _SLAB_LANES), jnp.float32)
    for r in range(10):                                   # rows 0..9: b1..b10
        b = p[2 * r + 1]
        slab = slab.at[r, :b.shape[1]].set(b[0])
    slab = slab.at[10, :p[8].shape[1]].set(p[8][0])       # row 10: w5 (1,10)
    slab = slab.at[11:14, :p[16].shape[1]].set(p[16])     # rows 11..13: w9 (3,10)
    return mxu_ws, slab


@functools.partial(jax.jit, static_argnames=("tb",))
def dagmm_forward(x, params, *, tb=1024):
    n = x.shape[0]
    x = x.astype(jnp.float32)

    # Batch tile: multiple of 8 sublanes, at most ceil(n/2) rounded to 8 so the
    # grid has >= 2 roughly-balanced "parallel" steps whenever n permits
    # (both v7x TensorCores get work); 1024 rows amortizes per-step overhead
    # while keeping per-step VMEM (~6 MiB) far below every generation's limit.
    half = _round_up(pl.cdiv(n, 2), 8)
    tb_eff = max(8, min(_round_up(tb, 8), half))
    grid = (pl.cdiv(n, tb_eff),)

    mxu_ws, slab = _prepare_params(params)

    # weights / packed slab: full-array blocks, constant index_map ->
    # VMEM-resident, no per-step re-DMA.
    w_specs = [pl.BlockSpec(w.shape, lambda i: (0, 0)) for w in mxu_ws]
    slab_spec = pl.BlockSpec(slab.shape, lambda i: (0, 0))

    out_xhat, out_small = pl.pallas_call(
        dagmm_kernel,
        out_shape=(jax.ShapeDtypeStruct((n, IN_DIM), jnp.float32),
                   jax.ShapeDtypeStruct((n, SMALL_W), jnp.float32)),
        grid=grid,
        in_specs=[pl.BlockSpec((tb_eff, IN_DIM), lambda i: (i, 0))]
                 + w_specs + [slab_spec],
        out_specs=(pl.BlockSpec((tb_eff, IN_DIM), lambda i: (i, 0)),
                   pl.BlockSpec((tb_eff, SMALL_W), lambda i: (i, 0))),
        compiler_params=pltpu.CompilerParams(
            dimension_semantics=("parallel",),          # shard grid on v7x's 2 TCs
            vmem_limit_bytes=32 * 1024 * 1024,          # comfortable on v5e/v6e/v7x
        ),
    )(x, *mxu_ws, slab)

    # x_hat comes out lane-exact (no slab slice); remaining slices are tiny.
    x_hat = out_xhat
    z = out_small[:, 0:Z_DIM + 2]                         # [z_c, rec1, rec2]
    z_c = out_small[:, 0:Z_DIM]
    gamma = out_small[:, Z_DIM + 2:Z_DIM + 2 + N_GMM]
    return z_c, x_hat, z, gamma


if __name__ == "__main__":
    key = jax.random.PRNGKey(0)
    key_x, key_p = jax.random.split(key)
    batch = 8
    x = jax.random.normal(key_x, (batch, IN_DIM), dtype=jnp.float32)
    params = init_params(key_p)

    z_c, x_hat, z, gamma = dagmm_forward(x, params)
    jax.block_until_ready((z_c, x_hat, z, gamma))

    assert z_c.shape == (batch, Z_DIM)
    assert x_hat.shape == (batch, IN_DIM)
    assert z.shape == (batch, Z_DIM + 2)
    assert gamma.shape == (batch, N_GMM)
    assert bool(jnp.all(jnp.isfinite(z)))
    assert bool(jnp.all(jnp.isfinite(gamma)))
    assert bool(jnp.all(jnp.abs(jnp.sum(gamma, axis=1) - 1.0) < 1e-5))
    print("KERNEL_OK")
</pallas_src>

<mosaic_0001>
module attributes {stable_mosaic.version = 11 : i64} {
  func.func @dagmm_kernel(%arg0: i32, %arg1: memref<8x118xf32, #tpu.memory_space<vmem>>, %arg2: memref<118x60xbf16, #tpu.memory_space<vmem>>, %arg3: memref<60x30xbf16, #tpu.memory_space<vmem>>, %arg4: memref<30x10xbf16, #tpu.memory_space<vmem>>, %arg5: memref<10x1xbf16, #tpu.memory_space<vmem>>, %arg6: memref<10x30xbf16, #tpu.memory_space<vmem>>, %arg7: memref<30x60xbf16, #tpu.memory_space<vmem>>, %arg8: memref<60x118xbf16, #tpu.memory_space<vmem>>, %arg9: memref<10x2xbf16, #tpu.memory_space<vmem>>, %arg10: memref<16x128xf32, #tpu.memory_space<vmem>>, %arg11: memref<8x118xf32, #tpu.memory_space<vmem>>, %arg12: memref<8x8xf32, #tpu.memory_space<vmem>>) attributes {dimension_semantics = [#tpu.dimension_semantics<parallel>], iteration_bounds = array<i64: 1>, scalar_prefetch = 0 : i64, scratch_operands = 0 : i64, tpu.core_type = #tpu.core_type<tc>, window_params = [{transform_indices = @transform_0, window_bounds = array<i64: 8, 118>}, {pipeline_mode = #tpu.pipeline_mode<synchronous>, transform_indices = @transform_1, window_bounds = array<i64: 118, 60>}, {pipeline_mode = #tpu.pipeline_mode<synchronous>, transform_indices = @transform_2, window_bounds = array<i64: 60, 30>}, {pipeline_mode = #tpu.pipeline_mode<synchronous>, transform_indices = @transform_3, window_bounds = array<i64: 30, 10>}, {pipeline_mode = #tpu.pipeline_mode<synchronous>, transform_indices = @transform_4, window_bounds = array<i64: 10, 1>}, {pipeline_mode = #tpu.pipeline_mode<synchronous>, transform_indices = @transform_5, window_bounds = array<i64: 10, 30>}, {pipeline_mode = #tpu.pipeline_mode<synchronous>, transform_indices = @transform_6, window_bounds = array<i64: 30, 60>}, {pipeline_mode = #tpu.pipeline_mode<synchronous>, transform_indices = @transform_7, window_bounds = array<i64: 60, 118>}, {pipeline_mode = #tpu.pipeline_mode<synchronous>, transform_indices = @transform_8, window_bounds = array<i64: 10, 2>}, {pipeline_mode = #tpu.pipeline_mode<synchronous>, transform_indices = @transform_9, window_bounds = array<i64: 16, 128>}, {transform_indices = @transform_10, window_bounds = array<i64: 8, 118>}, {transform_indices = @transform_11, window_bounds = array<i64: 8, 8>}]} {
    %c0 = arith.constant 0 : index
    %c0_0 = arith.constant 0 : index
    %0 = vector.load %arg1[%c0, %c0_0] : memref<8x118xf32, #tpu.memory_space<vmem>>, vector<8x118xf32>
    %c0_1 = arith.constant 0 : index
    %c0_2 = arith.constant 0 : index
    %1 = vector.load %arg10[%c0_1, %c0_2] : memref<16x128xf32, #tpu.memory_space<vmem>>, vector<16x128xf32>
    %2 = vector.extract_strided_slice %1 {offsets = [0, 0], sizes = [1, 60], strides = [1, 1]} : vector<16x128xf32> to vector<1x60xf32>
    %3 = vector.extract_strided_slice %1 {offsets = [1, 0], sizes = [1, 30], strides = [1, 1]} : vector<16x128xf32> to vector<1x30xf32>
    %4 = vector.extract_strided_slice %1 {offsets = [2, 0], sizes = [1, 10], strides = [1, 1]} : vector<16x128xf32> to vector<1x10xf32>
    %5 = vector.extract_strided_slice %1 {offsets = [3, 0], sizes = [1, 1], strides = [1, 1]} : vector<16x128xf32> to vector<1x1xf32>
    %6 = vector.extract_strided_slice %1 {offsets = [4, 0], sizes = [1, 10], strides = [1, 1]} : vector<16x128xf32> to vector<1x10xf32>
    %7 = vector.extract_strided_slice %1 {offsets = [5, 0], sizes = [1, 30], strides = [1, 1]} : vector<16x128xf32> to vector<1x30xf32>
    %8 = vector.extract_strided_slice %1 {offsets = [6, 0], sizes = [1, 60], strides = [1, 1]} : vector<16x128xf32> to vector<1x60xf32>
    %9 = vector.extract_strided_slice %1 {offsets = [7, 0], sizes = [1, 118], strides = [1, 1]} : vector<16x128xf32> to vector<1x118xf32>
    %10 = vector.extract_strided_slice %1 {offsets = [8, 0], sizes = [1, 10], strides = [1, 1]} : vector<16x128xf32> to vector<1x10xf32>
    %11 = vector.extract_strided_slice %1 {offsets = [9, 0], sizes = [1, 2], strides = [1, 1]} : vector<16x128xf32> to vector<1x2xf32>
    %12 = vector.extract_strided_slice %1 {offsets = [10, 0], sizes = [1, 10], strides = [1, 1]} : vector<16x128xf32> to vector<1x10xf32>
    %13 = vector.extract_strided_slice %1 {offsets = [11, 0], sizes = [1, 10], strides = [1, 1]} : vector<16x128xf32> to vector<1x10xf32>
    %14 = vector.extract_strided_slice %1 {offsets = [12, 0], sizes = [1, 10], strides = [1, 1]} : vector<16x128xf32> to vector<1x10xf32>
    %15 = vector.extract_strided_slice %1 {offsets = [13, 0], sizes = [1, 10], strides = [1, 1]} : vector<16x128xf32> to vector<1x10xf32>
    %16 = arith.truncf %0 : vector<8x118xf32> to vector<8x118xbf16>
    %c0_3 = arith.constant 0 : index
    %c0_4 = arith.constant 0 : index
    %17 = vector.load %arg2[%c0_3, %c0_4] : memref<118x60xbf16, #tpu.memory_space<vmem>>, vector<118x60xbf16>
    %cst = arith.constant dense<0.000000e+00> : vector<8x60xf32>
    %18 = tpu.matmul %16, %17, %cst {dimension_numbers = #tpu.dot_dimension_numbers<[1], [0], [0], [1], [0, 0, 1, 1], [], []>} : vector<8x118xbf16>, vector<118x60xbf16>, vector<8x60xf32> -> vector<8x60xf32>
    %19 = vector.broadcast %2 : vector<1x60xf32> to vector<8x60xf32>
    %20 = arith.addf %18, %19 : vector<8x60xf32>
    %21 = math.tanh %20 : vector<8x60xf32>
    %22 = arith.truncf %21 : vector<8x60xf32> to vector<8x60xbf16>
    %c0_5 = arith.constant 0 : index
    %c0_6 = arith.constant 0 : index
    %23 = vector.load %arg3[%c0_5, %c0_6] : memref<60x30xbf16, #tpu.memory_space<vmem>>, vector<60x30xbf16>
    %cst_7 = arith.constant dense<0.000000e+00> : vector<8x30xf32>
    %24 = tpu.matmul %22, %23, %cst_7 {dimension_numbers = #tpu.dot_dimension_numbers<[1], [0], [0], [1], [0, 0, 1, 1], [], []>} : vector<8x60xbf16>, vector<60x30xbf16>, vector<8x30xf32> -> vector<8x30xf32>
    %25 = vector.broadcast %3 : vector<1x30xf32> to vector<8x30xf32>
    %26 = arith.addf %24, %25 : vector<8x30xf32>
    %27 = math.tanh %26 : vector<8x30xf32>
    %28 = arith.truncf %27 : vector<8x30xf32> to vector<8x30xbf16>
    %c0_8 = arith.constant 0 : index
    %c0_9 = arith.constant 0 : index
    %29 = vector.load %arg4[%c0_8, %c0_9] : memref<30x10xbf16, #tpu.memory_space<vmem>>, vector<30x10xbf16>
    %cst_10 = arith.constant dense<0.000000e+00> : vector<8x10xf32>
    %30 = tpu.matmul %28, %29, %cst_10 {dimension_numbers = #tpu.dot_dimension_numbers<[1], [0], [0], [1], [0, 0, 1, 1], [], []>} : vector<8x30xbf16>, vector<30x10xbf16>, vector<8x10xf32> -> vector<8x10xf32>
    %31 = vector.broadcast %4 : vector<1x10xf32> to vector<8x10xf32>
    %32 = arith.addf %30, %31 : vector<8x10xf32>
    %33 = math.tanh %32 : vector<8x10xf32>
    %34 = arith.truncf %33 : vector<8x10xf32> to vector<8x10xbf16>
    %c0_11 = arith.constant 0 : index
    %c0_12 = arith.constant 0 : index
    %35 = vector.load %arg5[%c0_11, %c0_12] : memref<10x1xbf16, #tpu.memory_space<vmem>>, vector<10x1xbf16>
    %cst_13 = arith.constant dense<0.000000e+00> : vector<8x1xf32>
    %36 = tpu.matmul %34, %35, %cst_13 {dimension_numbers = #tpu.dot_dimension_numbers<[1], [0], [0], [1], [0, 0, 1, 1], [], []>} : vector<8x10xbf16>, vector<10x1xbf16>, vector<8x1xf32> -> vector<8x1xf32>
    %37 = vector.broadcast %5 : vector<1x1xf32> to vector<8x1xf32>
    %38 = arith.addf %36, %37 : vector<8x1xf32>
    %39 = vector.broadcast %38 : vector<8x1xf32> to vector<8x10xf32>
    %40 = vector.broadcast %12 : vector<1x10xf32> to vector<8x10xf32>
    %41 = arith.mulf %39, %40 : vector<8x10xf32>
    %42 = vector.broadcast %6 : vector<1x10xf32> to vector<8x10xf32>
    %43 = arith.addf %41, %42 : vector<8x10xf32>
    %44 = math.tanh %43 : vector<8x10xf32>
    %45 = arith.truncf %44 : vector<8x10xf32> to vector<8x10xbf16>
    %c0_14 = arith.constant 0 : index
    %c0_15 = arith.constant 0 : index
    %46 = vector.load %arg6[%c0_14, %c0_15] : memref<10x30xbf16, #tpu.memory_space<vmem>>, vector<10x30xbf16>
    %cst_16 = arith.constant dense<0.000000e+00> : vector<8x30xf32>
    %47 = tpu.matmul %45, %46, %cst_16 {dimension_numbers = #tpu.dot_dimension_numbers<[1], [0], [0], [1], [0, 0, 1, 1], [], []>} : vector<8x10xbf16>, vector<10x30xbf16>, vector<8x30xf32> -> vector<8x30xf32>
    %48 = vector.broadcast %7 : vector<1x30xf32> to vector<8x30xf32>
    %49 = arith.addf %47, %48 : vector<8x30xf32>
    %50 = math.tanh %49 : vector<8x30xf32>
    %51 = arith.truncf %50 : vector<8x30xf32> to vector<8x30xbf16>
    %c0_17 = arith.constant 0 : index
    %c0_18 = arith.constant 0 : index
    %52 = vector.load %arg7[%c0_17, %c0_18] : memref<30x60xbf16, #tpu.memory_space<vmem>>, vector<30x60xbf16>
    %cst_19 = arith.constant dense<0.000000e+00> : vector<8x60xf32>
    %53 = tpu.matmul %51, %52, %cst_19 {dimension_numbers = #tpu.dot_dimension_numbers<[1], [0], [0], [1], [0, 0, 1, 1], [], []>} : vector<8x30xbf16>, vector<30x60xbf16>, vector<8x60xf32> -> vector<8x60xf32>
    %54 = vector.broadcast %8 : vector<1x60xf32> to vector<8x60xf32>
    %55 = arith.addf %53, %54 : vector<8x60xf32>
    %56 = math.tanh %55 : vector<8x60xf32>
    %57 = arith.truncf %56 : vector<8x60xf32> to vector<8x60xbf16>
    %c0_20 = arith.constant 0 : index
    %c0_21 = arith.constant 0 : index
    %58 = vector.load %arg8[%c0_20, %c0_21] : memref<60x118xbf16, #tpu.memory_space<vmem>>, vector<60x118xbf16>
    %cst_22 = arith.constant dense<0.000000e+00> : vector<8x118xf32>
    %59 = tpu.matmul %57, %58, %cst_22 {dimension_numbers = #tpu.dot_dimension_numbers<[1], [0], [0], [1], [0, 0, 1, 1], [], []>} : vector<8x60xbf16>, vector<60x118xbf16>, vector<8x118xf32> -> vector<8x118xf32>
    %60 = vector.broadcast %9 : vector<1x118xf32> to vector<8x118xf32>
    %61 = arith.addf %59, %60 : vector<8x118xf32>
    %62 = arith.mulf %0, %0 : vector<8x118xf32>
    %cst_23 = arith.constant dense<0.000000e+00> : vector<8xf32>
    %63 = vector.multi_reduction <add>, %62, %cst_23 [1] : vector<8x118xf32> to vector<8xf32>
    %64 = vector.shape_cast %63 : vector<8xf32> to vector<8x1xf32>
    %65 = arith.mulf %61, %61 : vector<8x118xf32>
    %cst_24 = arith.constant dense<0.000000e+00> : vector<8xf32>
    %66 = vector.multi_reduction <add>, %65, %cst_24 [1] : vector<8x118xf32> to vector<8xf32>
    %67 = vector.shape_cast %66 : vector<8xf32> to vector<8x1xf32>
    %68 = arith.mulf %0, %61 : vector<8x118xf32>
    %cst_25 = arith.constant dense<0.000000e+00> : vector<8xf32>
    %69 = vector.multi_reduction <add>, %68, %cst_25 [1] : vector<8x118xf32> to vector<8xf32>
    %70 = vector.shape_cast %69 : vector<8xf32> to vector<8x1xf32>
    %71 = arith.addf %64, %67 : vector<8x1xf32>
    %cst_26 = arith.constant 2.000000e+00 : f32
    %72 = vector.broadcast %cst_26 : f32 to vector<8x1xf32>
    %73 = arith.mulf %72, %70 : vector<8x1xf32>
    %74 = arith.subf %71, %73 : vector<8x1xf32>
    %cst_27 = arith.constant 0.000000e+00 : f32
    %75 = vector.broadcast %cst_27 : f32 to vector<8x1xf32>
    %76 = arith.maximumf %74, %75 : vector<8x1xf32>
    %77 = math.sqrt %76 : vector<8x1xf32>
    %78 = math.rsqrt %64 : vector<8x1xf32>
    %79 = arith.mulf %77, %78 : vector<8x1xf32>
    %cst_28 = arith.constant 9.99999993E-9 : f32
    %cst_29 = arith.constant 9.99999993E-9 : f32
    %80 = arith.mulf %cst_28, %cst_29 : f32
    %81 = vector.broadcast %80 : f32 to vector<8x1xf32>
    %82 = arith.maximumf %64, %81 : vector<8x1xf32>
    %83 = math.rsqrt %82 : vector<8x1xf32>
    %cst_30 = arith.constant 9.99999993E-9 : f32
    %cst_31 = arith.constant 9.99999993E-9 : f32
    %84 = arith.mulf %cst_30, %cst_31 : f32
    %85 = vector.broadcast %84 : f32 to vector<8x1xf32>
    %86 = arith.maximumf %67, %85 : vector<8x1xf32>
    %87 = math.rsqrt %86 : vector<8x1xf32>
    %88 = arith.mulf %83, %87 : vector<8x1xf32>
    %89 = arith.mulf %70, %88 : vector<8x1xf32>
    %90 = vector.broadcast %38 : vector<8x1xf32> to vector<8x10xf32>
    %91 = vector.broadcast %13 : vector<1x10xf32> to vector<8x10xf32>
    %92 = arith.mulf %90, %91 : vector<8x10xf32>
    %93 = vector.broadcast %79 : vector<8x1xf32> to vector<8x10xf32>
    %94 = vector.broadcast %14 : vector<1x10xf32> to vector<8x10xf32>
    %95 = arith.mulf %93, %94 : vector<8x10xf32>
    %96 = arith.addf %92, %95 : vector<8x10xf32>
    %97 = vector.broadcast %89 : vector<8x1xf32> to vector<8x10xf32>
    %98 = vector.broadcast %15 : vector<1x10xf32> to vector<8x10xf32>
    %99 = arith.mulf %97, %98 : vector<8x10xf32>
    %100 = arith.addf %96, %99 : vector<8x10xf32>
    %101 = vector.broadcast %10 : vector<1x10xf32> to vector<8x10xf32>
    %102 = arith.addf %100, %101 : vector<8x10xf32>
    %103 = math.tanh %102 : vector<8x10xf32>
    %104 = arith.truncf %103 : vector<8x10xf32> to vector<8x10xbf16>
    %c0_32 = arith.constant 0 : index
    %c0_33 = arith.constant 0 : index
    %105 = vector.load %arg9[%c0_32, %c0_33] : memref<10x2xbf16, #tpu.memory_space<vmem>>, vector<10x2xbf16>
    %cst_34 = arith.constant dense<0.000000e+00> : vector<8x2xf32>
    %106 = tpu.matmul %104, %105, %cst_34 {dimension_numbers = #tpu.dot_dimension_numbers<[1], [0], [0], [1], [0, 0, 1, 1], [], []>} : vector<8x10xbf16>, vector<10x2xbf16>, vector<8x2xf32> -> vector<8x2xf32>
    %107 = vector.broadcast %11 : vector<1x2xf32> to vector<8x2xf32>
    %108 = arith.addf %106, %107 : vector<8x2xf32>
    %109 = vector.extract_strided_slice %108 {offsets = [0, 0], sizes = [8, 1], strides = [1, 1]} : vector<8x2xf32> to vector<8x1xf32>
    %110 = vector.extract_strided_slice %108 {offsets = [0, 1], sizes = [8, 1], strides = [1, 1]} : vector<8x2xf32> to vector<8x1xf32>
    %111 = arith.subf %109, %110 : vector<8x1xf32>
    %112 = arith.negf %111 : vector<8x1xf32>
    %113 = math.exp %112 : vector<8x1xf32>
    %cst_35 = arith.constant 1.000000e+00 : f32
    %114 = vector.broadcast %cst_35 : f32 to vector<8x1xf32>
    %115 = arith.addf %114, %113 : vector<8x1xf32>
    %116 = arith.divf %114, %115 : vector<8x1xf32>
    %cst_36 = arith.constant 1.000000e+00 : f32
    %117 = vector.broadcast %cst_36 : f32 to vector<8x1xf32>
    %118 = arith.subf %117, %116 : vector<8x1xf32>
    %c0_37 = arith.constant 0 : index
    %c0_38 = arith.constant 0 : index
    %119 = vector.load %arg11[%c0_37, %c0_38] : memref<8x118xf32, #tpu.memory_space<vmem>>, vector<8x118xf32>
    tpu.vector_store %arg11[%c0_37, %c0_38], %61 {strides = array<i32>} : memref<8x118xf32, #tpu.memory_space<vmem>>, vector<8x118xf32>,
    %cst_39 = arith.constant 0.000000e+00 : f32
    %120 = vector.broadcast %cst_39 : f32 to vector<8x3xf32>
    %121 = tpu.concatenate %38, %79, %89, %116, %118, %120 in 1 : vector<8x1xf32>, vector<8x1xf32>, vector<8x1xf32>, vector<8x1xf32>, vector<8x1xf32>, vector<8x3xf32> -> vector<8x8xf32>
    %c0_40 = arith.constant 0 : index
    %c0_41 = arith.constant 0 : index
    %122 = vector.load %arg12[%c0_40, %c0_41] : memref<8x8xf32, #tpu.memory_space<vmem>>, vector<8x8xf32>
    tpu.vector_store %arg12[%c0_40, %c0_41], %121 {strides = array<i32>} : memref<8x8xf32, #tpu.memory_space<vmem>>, vector<8x8xf32>,
    return
  }
  func.func @transform_0(%arg0: i32) -> (i32, i32) {
    %c0_i32 = arith.constant 0 : i32
    %c0_i32_0 = arith.constant 0 : i32
    return %arg0, %c0_i32 : i32, i32
  }
  func.func @transform_1(%arg0: i32) -> (i32, i32) {
    %c0_i32 = arith.constant 0 : i32
    %c0_i32_0 = arith.constant 0 : i32
    %c0_i32_1 = arith.constant 0 : i32
    return %c0_i32, %c0_i32_0 : i32, i32
  }
  func.func @transform_2(%arg0: i32) -> (i32, i32) {
    %c0_i32 = arith.constant 0 : i32
    %c0_i32_0 = arith.constant 0 : i32
    %c0_i32_1 = arith.constant 0 : i32
    return %c0_i32, %c0_i32_0 : i32, i32
  }
  func.func @transform_3(%arg0: i32) -> (i32, i32) {
    %c0_i32 = arith.constant 0 : i32
    %c0_i32_0 = arith.constant 0 : i32
    %c0_i32_1 = arith.constant 0 : i32
    return %c0_i32, %c0_i32_0 : i32, i32
  }
  func.func @transform_4(%arg0: i32) -> (i32, i32) {
    %c0_i32 = arith.constant 0 : i32
    %c0_i32_0 = arith.constant 0 : i32
    %c0_i32_1 = arith.constant 0 : i32
    return %c0_i32, %c0_i32_0 : i32, i32
  }
  func.func @transform_5(%arg0: i32) -> (i32, i32) {
    %c0_i32 = arith.constant 0 : i32
    %c0_i32_0 = arith.constant 0 : i32
    %c0_i32_1 = arith.constant 0 : i32
    return %c0_i32, %c0_i32_0 : i32, i32
  }
  func.func @transform_6(%arg0: i32) -> (i32, i32) {
    %c0_i32 = arith.constant 0 : i32
    %c0_i32_0 = arith.constant 0 : i32
    %c0_i32_1 = arith.constant 0 : i32
    return %c0_i32, %c0_i32_0 : i32, i32
  }
  func.func @transform_7(%arg0: i32) -> (i32, i32) {
    %c0_i32 = arith.constant 0 : i32
    %c0_i32_0 = arith.constant 0 : i32
    %c0_i32_1 = arith.constant 0 : i32
    return %c0_i32, %c0_i32_0 : i32, i32
  }
  func.func @transform_8(%arg0: i32) -> (i32, i32) {
    %c0_i32 = arith.constant 0 : i32
    %c0_i32_0 = arith.constant 0 : i32
    %c0_i32_1 = arith.constant 0 : i32
    return %c0_i32, %c0_i32_0 : i32, i32
  }
  func.func @transform_9(%arg0: i32) -> (i32, i32) {
    %c0_i32 = arith.constant 0 : i32
    %c0_i32_0 = arith.constant 0 : i32
    %c0_i32_1 = arith.constant 0 : i32
    return %c0_i32, %c0_i32_0 : i32, i32
  }
  func.func @transform_10(%arg0: i32) -> (i32, i32) {
    %c0_i32 = arith.constant 0 : i32
    %c0_i32_0 = arith.constant 0 : i32
    return %arg0, %c0_i32 : i32, i32
  }
  func.func @transform_11(%arg0: i32) -> (i32, i32) {
    %c0_i32 = arith.constant 0 : i32
    %c0_i32_0 = arith.constant 0 : i32
    return %arg0, %c0_i32 : i32, i32
  }
}

</mosaic_0001>

<llo_original>
// kernel: dagmm_forward.1
$region0: #{dagmm_forward.1}
  #allocation0 [shape = 'u32[]', space=smem, size = 0x4, offset = 0x4, fixed_abs, tag = 'smem constant byte address 0x4 - core index']
  #allocation1 [shape = 'u32[144,128]{1,0:T(1,128)}', space=vmem, size = 0x12000, scoped, tag = 'internal scratch']
  %s0 = inlined_call_operand.vmem [shape: f32[8,118], index: 0, kind: input, shape index: {}]
  %s1 = inlined_call_operand.vmem [shape: bf16[118,60], index: 1, kind: input, shape index: {}]
  %s2 = inlined_call_operand.vmem [shape: bf16[60,30], index: 2, kind: input, shape index: {}]
  %s3 = inlined_call_operand.vmem [shape: bf16[30,10], index: 3, kind: input, shape index: {}]
  %s4 = inlined_call_operand.vmem [shape: bf16[10,1], index: 4, kind: input, shape index: {}]
  %s5 = inlined_call_operand.vmem [shape: bf16[10,30], index: 5, kind: input, shape index: {}]
  %s6 = inlined_call_operand.vmem [shape: bf16[30,60], index: 6, kind: input, shape index: {}]
  %s7 = inlined_call_operand.vmem [shape: bf16[60,118], index: 7, kind: input, shape index: {}]
  %s8 = inlined_call_operand.vmem [shape: bf16[10,2], index: 8, kind: input, shape index: {}]
  %s9 = inlined_call_operand.vmem [shape: f32[16,128], index: 9, kind: input, shape index: {}]
  %s10 = inlined_call_operand.hbm [shape: f32[8,118], index: 10, kind: output, shape index: {0}]
  %s11 = inlined_call_operand.vmem [shape: f32[8,8], index: 11, kind: output, shape index: {1}]
  %12 = xla_tuple %s10, %s11
  %s13 = sld [smem:[#allocation0]]
  $region58: #{dagmm_forward.1} parent=0
    _
  %s15 = ssub.s32 1, %s13
  %s16 = scalar_select 0, %s15, %s13
  $region1: #{dagmm_forward.1} parent=0
    #allocation2 [shape = 'u8[4096]{0}', space=vmem, size = 0x1000, scoped, tag = 'output window, operand 0, single buffered']
    #allocation3 [shape = 's32[1]{0}', space=sflag, size = 0x4, scoped, tag = 'scoped memory for dagmm_forward.1']
    %17 = vsyncpa [#allocation3], 0
    // Predicated region
    $region2: #{dagmm_forward.1} parent=1 // pred_check
      _
    $region3: #{dagmm_forward.1} parent=1 // pred_check_branch
      %19 = sbr.rel (0) target = $region5
    $region4: #{dagmm_forward.1} parent=1 // pred_region
      _
    $region5: #{dagmm_forward.1} parent=1 // pred_fallthru
      _
    // Predicated region
    $region6: #{dagmm_forward.1} parent=1 // pred_check
      _
    $region7: #{dagmm_forward.1} parent=1 // pred_check_branch
      %21 = sbr.rel (0) target = $region9
    $region8: #{dagmm_forward.1} parent=1 // pred_region
      _
    $region9: #{dagmm_forward.1} parent=1 // pred_fallthru
      _
    // Predicated region
    $region10: #{dagmm_forward.1} parent=1 // pred_check
      _
    $region11: #{dagmm_forward.1} parent=1 // pred_check_branch
      %23 = sbr.rel (0) target = $region13
    $region12: #{dagmm_forward.1} parent=1 // pred_region
      _
    $region13: #{dagmm_forward.1} parent=1 // pred_fallthru
      _
    // Predicated region
    $region14: #{dagmm_forward.1} parent=1 // pred_check
      _
    $region15: #{dagmm_forward.1} parent=1 // pred_check_branch
      %25 = sbr.rel (0) target = $region17
    $region16: #{dagmm_forward.1} parent=1 // pred_region
      _
    $region17: #{dagmm_forward.1} parent=1 // pred_fallthru
      _
    // Predicated region
    $region18: #{dagmm_forward.1} parent=1 // pred_check
      _
    $region19: #{dagmm_forward.1} parent=1 // pred_check_branch
      %27 = sbr.rel (0) target = $region21
    $region20: #{dagmm_forward.1} parent=1 // pred_region
      _
    $region21: #{dagmm_forward.1} parent=1 // pred_fallthru
      _
    // Predicated region
    $region22: #{dagmm_forward.1} parent=1 // pred_check
      _
    $region23: #{dagmm_forward.1} parent=1 // pred_check_branch
      %29 = sbr.rel (0) target = $region25
    $region24: #{dagmm_forward.1} parent=1 // pred_region
      _
    $region25: #{dagmm_forward.1} parent=1 // pred_fallthru
      _
    // Predicated region
    $region26: #{dagmm_forward.1} parent=1 // pred_check
      _
    $region27: #{dagmm_forward.1} parent=1 // pred_check_branch
      %31 = sbr.rel (0) target = $region29
    $region28: #{dagmm_forward.1} parent=1 // pred_region
      _
    $region29: #{dagmm_forward.1} parent=1 // pred_fallthru
      _
    // Predicated region
    $region30: #{dagmm_forward.1} parent=1 // pred_check
      _
    $region31: #{dagmm_forward.1} parent=1 // pred_check_branch
      %33 = sbr.rel (0) target = $region33
    $region32: #{dagmm_forward.1} parent=1 // pred_region
      _
    $region33: #{dagmm_forward.1} parent=1 // pred_fallthru
      _
    // Predicated region
    $region34: #{dagmm_forward.1} parent=1 // pred_check
      _
    $region35: #{dagmm_forward.1} parent=1 // pred_check_branch
      %35 = sbr.rel (0) target = $region37
    $region36: #{dagmm_forward.1} parent=1 // pred_region
      _
    $region37: #{dagmm_forward.1} parent=1 // pred_fallthru
      _
    // Predicated region
    $region38: #{dagmm_forward.1} parent=1 // pred_check
      _
    $region39: #{dagmm_forward.1} parent=1 // pred_check_branch
      %37 = sbr.rel (0) target = $region41
    $region40: #{dagmm_forward.1} parent=1 // pred_region
      _
    $region41: #{dagmm_forward.1} parent=1 // pred_fallthru
      _
    %v39 = vld [vmem:[%s0] sm:$0xff]
    %v40 = vld [vmem:[%s9] sm:$0xff]
    %v41 = vld [vmem:[%s9 + $0x8] sm:$0xff]
    %v42 = vpack.c.bf16 %v39, %v39
    %v43 = vld [vmem:[%s1] sm:$0xf]
    %v44 = vld [vmem:[%s1 + $0x4] sm:$0xf]
    %v45 = vld [vmem:[%s1 + $0x8] sm:$0xf]
    %v46 = vld [vmem:[%s1 + $0xc] sm:$0xf]
    %v47 = vld [vmem:[%s1 + $0x10] sm:$0xf]
    %v48 = vld [vmem:[%s1 + $0x14] sm:$0xf]
    %v49 = vld [vmem:[%s1 + $0x18] sm:$0xf]
    %v50 = vld [vmem:[%s1 + $0x1c] sm:$0xf]
    %v51 = vld [vmem:[%s1 + $0x20] sm:$0xf]
    %v52 = vld [vmem:[%s1 + $0x24] sm:$0xf]
    %v53 = vld [vmem:[%s1 + $0x28] sm:$0xf]
    %v54 = vld [vmem:[%s1 + $0x2c] sm:$0xf]
    %v55 = vld [vmem:[%s1 + $0x30] sm:$0xf]
    %v56 = vld [vmem:[%s1 + $0x34] sm:$0xf]
    %v57 = vld [vmem:[%s1 + $0x38] sm:$0x7]
    %v58 = vlaneseq
    %v59 = vshrl.u32 %v58, 7
    %v60 = vsub.s32 0, %v59
    %v61 = vrot.slane %v40, %v60
    %v77 = vunpack.c.l.b16 %v43
    %v78 = vunpack.c.l.b16 %v44
    %v79 = vunpack.c.l.b16 %v45
    %v80 = vunpack.c.l.b16 %v46
    %v81 = vunpack.c.l.b16 %v47
    %v82 = vunpack.c.l.b16 %v48
    %v83 = vunpack.c.l.b16 %v49
    %v84 = vunpack.c.l.b16 %v50
    %v85 = vunpack.c.l.b16 %v51
    %v86 = vunpack.c.l.b16 %v52
    %v87 = vunpack.c.l.b16 %v53
    %v88 = vunpack.c.l.b16 %v54
    %v89 = vunpack.c.l.b16 %v55
    %v90 = vunpack.c.l.b16 %v56
    %v91 = vunpack.c.l.b16 %v57
    %v92 = vpack.c.b16 %v78, %v77
    %v93 = vpack.c.b16 %v80, %v79
    %v94 = vpack.c.b16 %v82, %v81
    %v95 = vpack.c.b16 %v84, %v83
    %v96 = vpack.c.b16 %v86, %v85
    %v97 = vpack.c.b16 %v88, %v87
    %v98 = vpack.c.b16 %v90, %v89
    %v99 = vpack.c.b16 %v91, %v91
    %vm107 = vcmask 965632
    %v109 = vsel %vm107, %v42, 0
    %vm111 = vcmask 1042432
    %v113 = vsel %vm111, %v99, 0
    %115 = vmatprep.subr.bf16.mxu0 0
    %116 = vmatpush1.bf16.msra.mxu0 %v92
    %117 = vmatprep.subr.bf16.mxu0 0
    %118 = vmatpush1.bf16.msra.mxu0 %v93
    %119 = vmatprep.subr.bf16.mxu0 0
    %120 = vmatpush1.bf16.msra.mxu0 %v94
    %121 = vmatprep.subr.bf16.mxu0 0
    %122 = vmatpush1.bf16.msra.mxu0 %v95
    %123 = vmatprep.subr.bf16.mxu0 0
    %124 = vmatpush1.bf16.msra.mxu0 %v96
    %125 = vmatprep.subr.bf16.mxu0 0
    %126 = vmatpush1.bf16.msra.mxu0 %v97
    %127 = vmatprep.subr.bf16.mxu0 0
    %128 = vmatpush1.bf16.msra.mxu0 %v98
    %129 = vmatprep.subr.bf16.mxu0 0
    %130 = vmatpush1.bf16.msra.mxu0 %v113
    %131 = vmatprep.subr.bf16.mxu0 0
    %132 = vmatpush1.bf16.msra.mxu0 0
    %133 = vmatprep.subr.bf16.mxu0 0
    %134 = vmatpush1.bf16.msra.mxu0 0
    %135 = vmatprep.subr.bf16.mxu0 0
    %136 = vmatpush1.bf16.msra.mxu0 0
    %137 = vmatprep.subr.bf16.mxu0 0
    %138 = vmatpush1.bf16.msra.mxu0 0
    %139 = vmatprep.subr.bf16.mxu0 0
    %140 = vmatpush1.bf16.msra.mxu0 0
    %141 = vmatprep.subr.bf16.mxu0 0
    %142 = vmatpush1.bf16.msra.mxu0 0
    %143 = vmatprep.subr.bf16.mxu0 0
    %144 = vmatpush1.bf16.msra.mxu0 0
    %145 = vmatprep.subr.bf16.mxu0 0
    %146 = vmatpush1.bf16.msra.mxu0 0
    %147 = vmatprep.mubr.bf16.mxu0 0
    %148 = vmatmul.mubr.bf16.gmra.mrb[0].mxu0 %v109
    %v149 = vpop.f32.mrb[0].mxu0
    %v150 = vadd.f32 %v61, %v149
    %v151 = vpop.f32.mrb[0].mxu0
    %v152 = vpop.f32.mrb[0].mxu0
    %v153 = vpop.f32.mrb[0].mxu0
    %154 = vdwg.mxu0
    %v155 = vtanh.pop %v150
    %v156 = vpack.c.bf16 %v155, %v155
    %v157 = vld [vmem:[%s2] sm:$0xf]
    %v158 = vld [vmem:[%s2 + $0x4] sm:$0xf]
    %v159 = vld [vmem:[%s2 + $0x8] sm:$0xf]
    %v160 = vld [vmem:[%s2 + $0xc] sm:$0xf]
    %v161 = vld [vmem:[%s2 + $0x10] sm:$0xf]
    %v162 = vld [vmem:[%s2 + $0x14] sm:$0xf]
    %v163 = vld [vmem:[%s2 + $0x18] sm:$0xf]
    %v164 = vld [vmem:[%s2 + $0x1c] sm:$0x3]
    %v165 = vlaneseq
    %v166 = vshrl.u32 %v165, 7
    %v167 = vsub.s32 1, %v166
    %v168 = vrot.slane %v40, %v167
    %v177 = vunpack.c.l.b16 %v157
    %v178 = vunpack.c.l.b16 %v158
    %v179 = vunpack.c.l.b16 %v159
    %v180 = vunpack.c.l.b16 %v160
    %v181 = vunpack.c.l.b16 %v161
    %v182 = vunpack.c.l.b16 %v162
    %v183 = vunpack.c.l.b16 %v163
    %v184 = vunpack.c.l.b16 %v164
    %v185 = vpack.c.b16 %v178, %v177
    %v186 = vpack.c.b16 %v180, %v179
    %v187 = vpack.c.b16 %v182, %v181
    %v188 = vpack.c.b16 %v184, %v183
    %vm192 = vcmask 490496
    %v194 = vsel %vm192, %v156, 0
    %vm196 = vcmask 1045504
    %v198 = vsel %vm196, %v188, 0
    %200 = vmatprep.subr.bf16.mxu0 0
    %201 = vmatpush1.bf16.msra.mxu0 %v185
    %202 = vmatprep.subr.bf16.mxu0 0
    %203 = vmatpush1.bf16.msra.mxu0 %v186
    %204 = vmatprep.subr.bf16.mxu0 0
    %205 = vmatpush1.bf16.msra.mxu0 %v187
    %206 = vmatprep.subr.bf16.mxu0 0
    %207 = vmatpush1.bf16.msra.mxu0 %v198
    %208 = vmatprep.subr.bf16.mxu0 0
    %209 = vmatpush1.bf16.msra.mxu0 0
    %210 = vmatprep.subr.bf16.mxu0 0
    %211 = vmatpush1.bf16.msra.mxu0 0
    %212 = vmatprep.subr.bf16.mxu0 0
    %213 = vmatpush1.bf16.msra.mxu0 0
    %214 = vmatprep.subr.bf16.mxu0 0
    %215 = vmatpush1.bf16.msra.mxu0 0
    %216 = vmatprep.subr.bf16.mxu0 0
    %217 = vmatpush1.bf16.msra.mxu0 0
    %218 = vmatprep.subr.bf16.mxu0 0
    %219 = vmatpush1.bf16.msra.mxu0 0
    %220 = vmatprep.subr.bf16.mxu0 0
    %221 = vmatpush1.bf16.msra.mxu0 0
    %222 = vmatprep.subr.bf16.mxu0 0
    %223 = vmatpush1.bf16.msra.mxu0 0
    %224 = vmatprep.subr.bf16.mxu0 0
    %225 = vmatpush1.bf16.msra.mxu0 0
    %226 = vmatprep.subr.bf16.mxu0 0
    %227 = vmatpush1.bf16.msra.mxu0 0
    %228 = vmatprep.subr.bf16.mxu0 0
    %229 = vmatpush1.bf16.msra.mxu0 0
    %230 = vmatprep.subr.bf16.mxu0 0
    %231 = vmatpush1.bf16.msra.mxu0 0
    %232 = vmatprep.mubr.bf16.mxu0 0
    %233 = vmatmul.mubr.bf16.gmra.mrb[0].mxu0 %v194
    %v234 = vpop.f32.mrb[0].mxu0
    %v235 = vadd.f32 %v168, %v234
    %v236 = vpop.f32.mrb[0].mxu0
    %v237 = vpop.f32.mrb[0].mxu0
    %v238 = vpop.f32.mrb[0].mxu0
    %239 = vdwg.mxu0
    %v240 = vtanh.pop %v235
    %v241 = vpack.c.bf16 %v240, %v240
    %v242 = vld [vmem:[%s3] sm:$0xf]
    %v243 = vld [vmem:[%s3 + $0x4] sm:$0xf]
    %v244 = vld [vmem:[%s3 + $0x8] sm:$0xf]
    %v245 = vld [vmem:[%s3 + $0xc] sm:$0x7]
    %v246 = vlaneseq
    %v247 = vshrl.u32 %v246, 7
    %v248 = vsub.s32 2, %v247
    %v249 = vrot.slane %v40, %v248
    %v254 = vunpack.c.l.b16 %v242
    %v255 = vunpack.c.l.b16 %v243
    %v256 = vunpack.c.l.b16 %v244
    %v257 = vunpack.c.l.b16 %v245
    %v258 = vpack.c.b16 %v255, %v254
    %v259 = vpack.c.b16 %v257, %v256
    %vm261 = vcmask 244736
    %v263 = vsel %vm261, %v241, 0
    %vm265 = vcmask 1046528
    %v267 = vsel %vm265, %v259, 0
    %269 = vmatprep.subr.bf16.mxu0 0
    %270 = vmatpush1.bf16.msra.mxu0 %v258
    %271 = vmatprep.subr.bf16.mxu0 0
    %272 = vmatpush1.bf16.msra.mxu0 %v267
    %273 = vmatprep.subr.bf16.mxu0 0
    %274 = vmatpush1.bf16.msra.mxu0 0
    %275 = vmatprep.subr.bf16.mxu0 0
    %276 = vmatpush1.bf16.msra.mxu0 0
    %277 = vmatprep.subr.bf16.mxu0 0
    %278 = vmatpush1.bf16.msra.mxu0 0
    %279 = vmatprep.subr.bf16.mxu0 0
    %280 = vmatpush1.bf16.msra.mxu0 0
    %281 = vmatprep.subr.bf16.mxu0 0
    %282 = vmatpush1.bf16.msra.mxu0 0
    %283 = vmatprep.subr.bf16.mxu0 0
    %284 = vmatpush1.bf16.msra.mxu0 0
    %285 = vmatprep.subr.bf16.mxu0 0
    %286 = vmatpush1.bf16.msra.mxu0 0
    %287 = vmatprep.subr.bf16.mxu0 0
    %288 = vmatpush1.bf16.msra.mxu0 0
    %289 = vmatprep.subr.bf16.mxu0 0
    %290 = vmatpush1.bf16.msra.mxu0 0
    %291 = vmatprep.subr.bf16.mxu0 0
    %292 = vmatpush1.bf16.msra.mxu0 0
    %293 = vmatprep.subr.bf16.mxu0 0
    %294 = vmatpush1.bf16.msra.mxu0 0
    %295 = vmatprep.subr.bf16.mxu0 0
    %296 = vmatpush1.bf16.msra.mxu0 0
    %297 = vmatprep.subr.bf16.mxu0 0
    %298 = vmatpush1.bf16.msra.mxu0 0
    %299 = vmatprep.subr.bf16.mxu0 0
    %300 = vmatpush1.bf16.msra.mxu0 0
    %301 = vmatprep.mubr.bf16.mxu0 0
    %302 = vmatmul.mubr.bf16.gmra.mrb[0].mxu0 %v263
    %v303 = vpop.f32.mrb[0].mxu0
    %v304 = vadd.f32 %v249, %v303
    %v305 = vpop.f32.mrb[0].mxu0
    %v306 = vpop.f32.mrb[0].mxu0
    %v307 = vpop.f32.mrb[0].mxu0
    %308 = vdwg.mxu0
    %v309 = vtanh.pop %v304
    %v310 = vpack.c.bf16 %v309, %v309
    %v311 = vld [vmem:[%s4] sm:$0xf]
    %v312 = vld [vmem:[%s4 + $0x4] sm:$0x1]
    %v313 = vlaneseq
    %v314 = vshrl.u32 %v313, 7
    %v315 = vsub.s32 3, %v314
    %v316 = vrot.slane %v40, %v315
    %v319 = vunpack.c.l.b16 %v311
    %v320 = vunpack.c.l.b16 %v312
    %v321 = vpack.c.b16 %v320, %v319
    %vm322 = vcmask 80896
    %v324 = vsel %vm322, %v310, 0
    %vm326 = vcmask 1044480
    %v328 = vsel %vm326, %v321, 0
    %330 = vmatprep.subr.bf16.mxu0 0
    %331 = vmatpush1.bf16.msra.mxu0 %v328
    %332 = vmatprep.subr.bf16.mxu0 0
    %333 = vmatpush1.bf16.msra.mxu0 0
    %334 = vmatprep.subr.bf16.mxu0 0
    %335 = vmatpush1.bf16.msra.mxu0 0
    %336 = vmatprep.subr.bf16.mxu0 0
    %337 = vmatpush1.bf16.msra.mxu0 0
    %338 = vmatprep.subr.bf16.mxu0 0
    %339 = vmatpush1.bf16.msra.mxu0 0
    %340 = vmatprep.subr.bf16.mxu0 0
    %341 = vmatpush1.bf16.msra.mxu0 0
    %342 = vmatprep.subr.bf16.mxu0 0
    %343 = vmatpush1.bf16.msra.mxu0 0
    %344 = vmatprep.subr.bf16.mxu0 0
    %345 = vmatpush1.bf16.msra.mxu0 0
    %346 = vmatprep.subr.bf16.mxu0 0
    %347 = vmatpush1.bf16.msra.mxu0 0
    %348 = vmatprep.subr.bf16.mxu0 0
    %349 = vmatpush1.bf16.msra.mxu0 0
    %350 = vmatprep.subr.bf16.mxu0 0
    %351 = vmatpush1.bf16.msra.mxu0 0
    %352 = vmatprep.subr.bf16.mxu0 0
    %353 = vmatpush1.bf16.msra.mxu0 0
    %354 = vmatprep.subr.bf16.mxu0 0
    %355 = vmatpush1.bf16.msra.mxu0 0
    %356 = vmatprep.subr.bf16.mxu0 0
    %357 = vmatpush1.bf16.msra.mxu0 0
    %358 = vmatprep.subr.bf16.mxu0 0
    %359 = vmatpush1.bf16.msra.mxu0 0
    %360 = vmatprep.subr.bf16.mxu0 0
    %361 = vmatpush1.bf16.msra.mxu0 0
    %362 = vmatprep.mubr.bf16.mxu0 0
    %363 = vmatmul.mubr.bf16.gmra.mrb[0].mxu0 %v324
    %v364 = vpop.f32.mrb[0].mxu0
    %v365 = vadd.f32 %v316, %v364
    %v366 = vpop.f32.mrb[0].mxu0
    %v367 = vpop.f32.mrb[0].mxu0
    %v368 = vpop.f32.mrb[0].mxu0
    %369 = vdwg.mxu0
    %371 = vset.pattern.permute.xlu0 0
    %372 = vperm.xlu0 %371, %v365
    %v373 = vpop.permute.xlu0 %372
    %v375 = vlaneseq
    %v376 = vshrl.u32 %v375, 7
    %v377 = vsub.s32 2, %v376
    %v378 = vrot.slane %v41, %v377
    %v379 = vmul.f32 %v373, %v378
    %v380 = vlaneseq
    %v381 = vshrl.u32 %v380, 7
    %v382 = vsub.s32 4, %v381
    %v383 = vrot.slane %v40, %v382
    %v384 = vadd.f32 %v379, %v383
    %v385 = vtanh.pop %v384
    %v386 = vpack.c.bf16 %v385, %v385
    %v387 = vld [vmem:[%s5] sm:$0xf]
    %v388 = vld [vmem:[%s5 + $0x4] sm:$0x1]
    %v389 = vlaneseq
    %v390 = vshrl.u32 %v389, 7
    %v391 = vsub.s32 5, %v390
    %v392 = vrot.slane %v40, %v391
    %v395 = vunpack.c.l.b16 %v387
    %v396 = vunpack.c.l.b16 %v388
    %v397 = vpack.c.b16 %v396, %v395
    %v399 = vsel %vm322, %v386, 0
    %v402 = vsel %vm326, %v397, 0
    %404 = vmatprep.subr.bf16.mxu0 0
    %405 = vmatpush1.bf16.msra.mxu0 %v402
    %406 = vmatprep.subr.bf16.mxu0 0
    %407 = vmatpush1.bf16.msra.mxu0 0
    %408 = vmatprep.subr.bf16.mxu0 0
    %409 = vmatpush1.bf16.msra.mxu0 0
    %410 = vmatprep.subr.bf16.mxu0 0
    %411 = vmatpush1.bf16.msra.mxu0 0
    %412 = vmatprep.subr.bf16.mxu0 0
    %413 = vmatpush1.bf16.msra.mxu0 0
    %414 = vmatprep.subr.bf16.mxu0 0
    %415 = vmatpush1.bf16.msra.mxu0 0
    %416 = vmatprep.subr.bf16.mxu0 0
    %417 = vmatpush1.bf16.msra.mxu0 0
    %418 = vmatprep.subr.bf16.mxu0 0
    %419 = vmatpush1.bf16.msra.mxu0 0
    %420 = vmatprep.subr.bf16.mxu0 0
    %421 = vmatpush1.bf16.msra.mxu0 0
    %422 = vmatprep.subr.bf16.mxu0 0
    %423 = vmatpush1.bf16.msra.mxu0 0
    %424 = vmatprep.subr.bf16.mxu0 0
    %425 = vmatpush1.bf16.msra.mxu0 0
    %426 = vmatprep.subr.bf16.mxu0 0
    %427 = vmatpush1.bf16.msra.mxu0 0
    %428 = vmatprep.subr.bf16.mxu0 0
    %429 = vmatpush1.bf16.msra.mxu0 0
    %430 = vmatprep.subr.bf16.mxu0 0
    %431 = vmatpush1.bf16.msra.mxu0 0
    %432 = vmatprep.subr.bf16.mxu0 0
    %433 = vmatpush1.bf16.msra.mxu0 0
    %434 = vmatprep.subr.bf16.mxu0 0
    %435 = vmatpush1.bf16.msra.mxu0 0
    %436 = vmatprep.mubr.bf16.mxu0 0
    %437 = vmatmul.mubr.bf16.gmra.mrb[0].mxu0 %v399
    %v438 = vpop.f32.mrb[0].mxu0
    %v439 = vadd.f32 %v392, %v438
    %v440 = vpop.f32.mrb[0].mxu0
    %v441 = vpop.f32.mrb[0].mxu0
    %v442 = vpop.f32.mrb[0].mxu0
    %443 = vdwg.mxu0
    %v444 = vtanh.pop %v439
    %v445 = vpack.c.bf16 %v444, %v444
    %v446 = vld [vmem:[%s6] sm:$0xf]
    %v447 = vld [vmem:[%s6 + $0x4] sm:$0xf]
    %v448 = vld [vmem:[%s6 + $0x8] sm:$0xf]
    %v449 = vld [vmem:[%s6 + $0xc] sm:$0x7]
    %v450 = vlaneseq
    %v451 = vshrl.u32 %v450, 7
    %v452 = vsub.s32 6, %v451
    %v453 = vrot.slane %v40, %v452
    %v458 = vunpack.c.l.b16 %v446
    %v459 = vunpack.c.l.b16 %v447
    %v460 = vunpack.c.l.b16 %v448
    %v461 = vunpack.c.l.b16 %v449
    %v462 = vpack.c.b16 %v459, %v458
    %v463 = vpack.c.b16 %v461, %v460
    %v466 = vsel %vm261, %v445, 0
    %v469 = vsel %vm265, %v463, 0
    %471 = vmatprep.subr.bf16.mxu0 0
    %472 = vmatpush1.bf16.msra.mxu0 %v462
    %473 = vmatprep.subr.bf16.mxu0 0
    %474 = vmatpush1.bf16.msra.mxu0 %v469
    %475 = vmatprep.subr.bf16.mxu0 0
    %476 = vmatpush1.bf16.msra.mxu0 0
    %477 = vmatprep.subr.bf16.mxu0 0
    %478 = vmatpush1.bf16.msra.mxu0 0
    %479 = vmatprep.subr.bf16.mxu0 0
    %480 = vmatpush1.bf16.msra.mxu0 0
    %481 = vmatprep.subr.bf16.mxu0 0
    %482 = vmatpush1.bf16.msra.mxu0 0
    %483 = vmatprep.subr.bf16.mxu0 0
    %484 = vmatpush1.bf16.msra.mxu0 0
    %485 = vmatprep.subr.bf16.mxu0 0
    %486 = vmatpush1.bf16.msra.mxu0 0
    %487 = vmatprep.subr.bf16.mxu0 0
    %488 = vmatpush1.bf16.msra.mxu0 0
    %489 = vmatprep.subr.bf16.mxu0 0
    %490 = vmatpush1.bf16.msra.mxu0 0
    %491 = vmatprep.subr.bf16.mxu0 0
    %492 = vmatpush1.bf16.msra.mxu0 0
    %493 = vmatprep.subr.bf16.mxu0 0
    %494 = vmatpush1.bf16.msra.mxu0 0
    %495 = vmatprep.subr.bf16.mxu0 0
    %496 = vmatpush1.bf16.msra.mxu0 0
    %497 = vmatprep.subr.bf16.mxu0 0
    %498 = vmatpush1.bf16.msra.mxu0 0
    %499 = vmatprep.subr.bf16.mxu0 0
    %500 = vmatpush1.bf16.msra.mxu0 0
    %501 = vmatprep.subr.bf16.mxu0 0
    %502 = vmatpush1.bf16.msra.mxu0 0
    %503 = vmatprep.mubr.bf16.mxu0 0
    %504 = vmatmul.mubr.bf16.gmra.mrb[0].mxu0 %v466
    %v505 = vpop.f32.mrb[0].mxu0
    %v506 = vadd.f32 %v453, %v505
    %v507 = vpop.f32.mrb[0].mxu0
    %v508 = vpop.f32.mrb[0].mxu0
    %v509 = vpop.f32.mrb[0].mxu0
    %510 = vdwg.mxu0
    %v511 = vtanh.pop %v506
    %v512 = vpack.c.bf16 %v511, %v511
    %v513 = vld [vmem:[%s7] sm:$0xf]
    %v514 = vld [vmem:[%s7 + $0x4] sm:$0xf]
    %v515 = vld [vmem:[%s7 + $0x8] sm:$0xf]
    %v516 = vld [vmem:[%s7 + $0xc] sm:$0xf]
    %v517 = vld [vmem:[%s7 + $0x10] sm:$0xf]
    %v518 = vld [vmem:[%s7 + $0x14] sm:$0xf]
    %v519 = vld [vmem:[%s7 + $0x18] sm:$0xf]
    %v520 = vld [vmem:[%s7 + $0x1c] sm:$0x3]
    %v521 = vlaneseq
    %v522 = vshrl.u32 %v521, 7
    %v523 = vsub.s32 7, %v522
    %v524 = vrot.slane %v40, %v523
    %v533 = vunpack.c.l.b16 %v513
    %v534 = vunpack.c.l.b16 %v514
    %v535 = vunpack.c.l.b16 %v515
    %v536 = vunpack.c.l.b16 %v516
    %v537 = vunpack.c.l.b16 %v517
    %v538 = vunpack.c.l.b16 %v518
    %v539 = vunpack.c.l.b16 %v519
    %v540 = vunpack.c.l.b16 %v520
    %v541 = vpack.c.b16 %v534, %v533
    %v542 = vpack.c.b16 %v536, %v535
    %v543 = vpack.c.b16 %v538, %v537
    %v544 = vpack.c.b16 %v540, %v539
    %v549 = vsel %vm192, %v512, 0
    %v552 = vsel %vm196, %v544, 0
    %554 = vmatprep.subr.bf16.mxu0 0
    %555 = vmatpush1.bf16.msra.mxu0 %v541
    %556 = vmatprep.subr.bf16.mxu0 0
    %557 = vmatpush1.bf16.msra.mxu0 %v542
    %558 = vmatprep.subr.bf16.mxu0 0
    %559 = vmatpush1.bf16.msra.mxu0 %v543
    %560 = vmatprep.subr.bf16.mxu0 0
    %561 = vmatpush1.bf16.msra.mxu0 %v552
    %562 = vmatprep.subr.bf16.mxu0 0
    %563 = vmatpush1.bf16.msra.mxu0 0
    %564 = vmatprep.subr.bf16.mxu0 0
    %565 = vmatpush1.bf16.msra.mxu0 0
    %566 = vmatprep.subr.bf16.mxu0 0
    %567 = vmatpush1.bf16.msra.mxu0 0
    %568 = vmatprep.subr.bf16.mxu0 0
    %569 = vmatpush1.bf16.msra.mxu0 0
    %570 = vmatprep.subr.bf16.mxu0 0
    %571 = vmatpush1.bf16.msra.mxu0 0
    %572 = vmatprep.subr.bf16.mxu0 0
    %573 = vmatpush1.bf16.msra.mxu0 0
    %574 = vmatprep.subr.bf16.mxu0 0
    %575 = vmatpush1.bf16.msra.mxu0 0
    %576 = vmatprep.subr.bf16.mxu0 0
    %577 = vmatpush1.bf16.msra.mxu0 0
    %578 = vmatprep.subr.bf16.mxu0 0
    %579 = vmatpush1.bf16.msra.mxu0 0
    %580 = vmatprep.subr.bf16.mxu0 0
    %581 = vmatpush1.bf16.msra.mxu0 0
    %582 = vmatprep.subr.bf16.mxu0 0
    %583 = vmatpush1.bf16.msra.mxu0 0
    %584 = vmatprep.subr.bf16.mxu0 0
    %585 = vmatpush1.bf16.msra.mxu0 0
    %586 = vmatprep.mubr.bf16.mxu0 0
    %587 = vmatmul.mubr.bf16.gmra.mrb[0].mxu0 %v549
    %v588 = vpop.f32.mrb[0].mxu0
    %v589 = vadd.f32 %v524, %v588
    %v590 = vpop.f32.mrb[0].mxu0
    %v591 = vpop.f32.mrb[0].mxu0
    %v592 = vpop.f32.mrb[0].mxu0
    %593 = vdwg.mxu0
    %v594 = vmul.f32 %v39, %v39
    %v595 = vsel %vm107, %v594, 0.0
    %596 = vadd.xlane.f32.xlu0 %v595
    %v597 = vpop.xlane.xlu0 %596
    %v598 = vmul.f32 %v589, %v589
    %v599 = vsel %vm107, %v598, 0.0
    %600 = vadd.xlane.f32.xlu0 %v599
    %v601 = vpop.xlane.xlu0 %600
    %v602 = vmul.f32 %v39, %v589
    %v603 = vsel %vm107, %v602, 0.0
    %604 = vadd.xlane.f32.xlu0 %v603
    %v605 = vpop.xlane.xlu0 %604
    %v606 = vadd.f32 %v597, %v601
    %v607 = vmul.f32 %v605, 2.0
    %v608 = vsub.f32 %v606, %v607
    %v609 = vmax.f32 %v608, 0.0
    %v610 = vrsqrt.pop %v609
    %v611 = vmul.f32 %v609, %v610
    %vm612 = vcmp.eq.f32.partialorder %v609, inf
    %v613 = vsel %vm612, %v609, %v611
    %vm614 = vcmp.eq.f32.partialorder %v609, 0.0
    %v615 = vand.u32 %v609, 2147483648
    %v616 = vsel %vm614, %v615, %v613
    %v617 = vrsqrt.pop %v597
    %v618 = vmul.f32 %v616, %v617
    %v619 = vmax.f32 %v597, 1e-16
    %v620 = vrsqrt.pop %v619
    %v621 = vmax.f32 %v601, 1e-16
    %v622 = vrsqrt.pop %v621
    %v623 = vmul.f32 %v620, %v622
    %v624 = vmul.f32 %v605, %v623
    %v625 = vlaneseq
    %v626 = vshrl.u32 %v625, 7
    %v627 = vsub.s32 3, %v626
    %v628 = vrot.slane %v41, %v627
    %v629 = vmul.f32 %v373, %v628
    %v630 = vlaneseq
    %v631 = vshrl.u32 %v630, 7
    %v632 = vsub.s32 4, %v631
    %v633 = vrot.slane %v41, %v632
    %v634 = vmul.f32 %v618, %v633
    %v635 = vadd.f32 %v629, %v634
    %v636 = vlaneseq
    %v637 = vshrl.u32 %v636, 7
    %v638 = vsub.s32 5, %v637
    %v639 = vrot.slane %v41, %v638
    %v640 = vmul.f32 %v624, %v639
    %v641 = vadd.f32 %v635, %v640
    %v642 = vlaneseq
    %v643 = vshrl.u32 %v642, 7
    %v644 = vsub.s32 0, %v643
    %v645 = vrot.slane %v41, %v644
    %v646 = vadd.f32 %v641, %v645
    %v647 = vtanh.pop %v646
    %v648 = vpack.c.bf16 %v647, %v647
    %v649 = vld [vmem:[%s8] sm:$0xf]
    %v650 = vld [vmem:[%s8 + $0x4] sm:$0x1]
    %v651 = vlaneseq
    %v652 = vshrl.u32 %v651, 7
    %v653 = vsub.s32 1, %v652
    %v654 = vrot.slane %v41, %v653
    %v657 = vunpack.c.l.b16 %v649
    %v658 = vunpack.c.l.b16 %v650
    %v659 = vpack.c.b16 %v658, %v657
    %v661 = vsel %vm322, %v648, 0
    %v664 = vsel %vm326, %v659, 0
    %666 = vmatprep.subr.bf16.mxu0 0
    %667 = vmatpush1.bf16.msra.mxu0 %v664
    %668 = vmatprep.subr.bf16.mxu0 0
    %669 = vmatpush1.bf16.msra.mxu0 0
    %670 = vmatprep.subr.bf16.mxu0 0
    %671 = vmatpush1.bf16.msra.mxu0 0
    %672 = vmatprep.subr.bf16.mxu0 0
    %673 = vmatpush1.bf16.msra.mxu0 0
    %674 = vmatprep.subr.bf16.mxu0 0
    %675 = vmatpush1.bf16.msra.mxu0 0
    %676 = vmatprep.subr.bf16.mxu0 0
    %677 = vmatpush1.bf16.msra.mxu0 0
    %678 = vmatprep.subr.bf16.mxu0 0
    %679 = vmatpush1.bf16.msra.mxu0 0
    %680 = vmatprep.subr.bf16.mxu0 0
    %681 = vmatpush1.bf16.msra.mxu0 0
    %682 = vmatprep.subr.bf16.mxu0 0
    %683 = vmatpush1.bf16.msra.mxu0 0
    %684 = vmatprep.subr.bf16.mxu0 0
    %685 = vmatpush1.bf16.msra.mxu0 0
    %686 = vmatprep.subr.bf16.mxu0 0
    %687 = vmatpush1.bf16.msra.mxu0 0
    %688 = vmatprep.subr.bf16.mxu0 0
    %689 = vmatpush1.bf16.msra.mxu0 0
    %690 = vmatprep.subr.bf16.mxu0 0
    %691 = vmatpush1.bf16.msra.mxu0 0
    %692 = vmatprep.subr.bf16.mxu0 0
    %693 = vmatpush1.bf16.msra.mxu0 0
    %694 = vmatprep.subr.bf16.mxu0 0
    %695 = vmatpush1.bf16.msra.mxu0 0
    %696 = vmatprep.subr.bf16.mxu0 0
    %697 = vmatpush1.bf16.msra.mxu0 0
    %698 = vmatprep.mubr.bf16.mxu0 0
    %699 = vmatmul.mubr.bf16.gmra.mrb[0].mxu0 %v661
    %v700 = vpop.f32.mrb[0].mxu0
    %v701 = vadd.f32 %v654, %v700
    %v702 = vpop.f32.mrb[0].mxu0
    %v703 = vpop.f32.mrb[0].mxu0
    %v704 = vpop.f32.mrb[0].mxu0
    %705 = vdwg.mxu0
    %707 = vrot.lane.b32.xlu0 %v701, 127
    %v708 = vpop.permute.xlu0 %707
    %v710 = vsub.f32 %v701, %v708
    %v711 = vxor.u32 %v710, 2147483648
    %v712 = vmul.f32 %v711, 1.442695
    %v713 = vpow.pop %v712
    %v714 = vadd.f32 %v713, 1.0
    %v715 = vrcp.pop %v714
    %v716 = vmul.f32 1.0, %v715
    %v717 = vsub.f32 1.0, %v716
    %718 = vst.msk [vmem:[#allocation2] sm:$0xff] %vm107, %v589
    %720 = vrot.lane.b32.xlu0 %v716, 3
    %v721 = vpop.permute.xlu0 %720
    %724 = vrot.lane.b32.xlu0 %v717, 4
    %v725 = vpop.permute.xlu0 %724
    %vm727 = vcmask 7168
    %v728 = vsel %vm727, %v365, %v618
    %vm729 = vcmask 15360
    %v730 = vsel %vm729, %v728, %v624
    %vm731 = vcmask 23552
    %v732 = vsel %vm731, %v730, %v721
    %vm733 = vcmask 31744
    %v734 = vsel %vm733, %v732, %v725
    %vm735 = vcmask 39936
    %v736 = vsel %vm735, %v734, 0.0
    %vm737 = vcmask 64512
    %738 = vst.msk [vmem:[%s11] sm:$0xff] %vm737, %v736
    // Predicated region
    $region42: #{dagmm_forward.1} parent=1 // pred_check
      _
    $region43: #{dagmm_forward.1} parent=1 // pred_check_branch
      %740 = sbr.rel (0) target = $region45
    $region44: #{dagmm_forward.1} parent=1 // pred_region
      %s742 = ssub.s32 128, 128
      %743 = vsyncadd [#allocation3], %s742
      %s745 = sshll.u32 [#allocation2], 4
      %s746 = int_to_ptr.vmem [resolvable:$true] %s745
      %748 = dma.vmem_to_hbm [thread:$0]  %s746, 128, %s10, [#allocation3]
    $region45: #{dagmm_forward.1} parent=1 // pred_fallthru
      _
    // Predicated region
    $region46: #{dagmm_forward.1} parent=1 // pred_check
      _
    $region47: #{dagmm_forward.1} parent=1 // pred_check_branch
      %750 = sbr.rel (0) target = $region49
    $region48: #{dagmm_forward.1} parent=1 // pred_region
      _
    $region49: #{dagmm_forward.1} parent=1 // pred_fallthru
      _
    // Predicated region
    $region50: #{dagmm_forward.1} parent=1 // pred_check
      _
    $region51: #{dagmm_forward.1} parent=1 // pred_check_branch
      %752 = sbr.rel (0) target = $region53
    $region52: #{dagmm_forward.1} parent=1 // pred_region
      %753 = dma.done [#allocation3], 128
    $region53: #{dagmm_forward.1} parent=1 // pred_fallthru
      _
    // Predicated region
    $region54: #{dagmm_forward.1} parent=1 // pred_check
      _
    $region55: #{dagmm_forward.1} parent=1 // pred_check_branch
      %755 = sbr.rel (0) target = $region57
    $region56: #{dagmm_forward.1} parent=1 // pred_region
      _
    $region57: #{dagmm_forward.1} parent=1 // pred_fallthru
      _
    %756 = vsyncpa [#allocation3], 1

</llo_original>
